<compile_context>
chip_gen: v7x
topology: tpu7x:2x2x1
jax: 0.10.0
libtpu: 0.0.40
codegen_flags: <defaults>
</compile_context>

<pallas_src>
import functools
import math

import jax
import jax.numpy as jnp
from jax.experimental import pallas as pl
from jax.experimental.pallas import tpu as pltpu


def _build_pe_table(d_model: int, max_len: int, dtype=jnp.float32) -> jnp.ndarray:
    """Replicates the PyTorch __init__ buffer: shape (max_len, 1, d_model)."""
    position = jnp.arange(max_len, dtype=jnp.float32)[:, None]                     # (max_len, 1)
    div_term = jnp.exp(
        jnp.arange(0, d_model, 2, dtype=jnp.float32) * (-math.log(10000.0) / d_model)
    )                                                                               # (ceil(d/2),)
    angles = position * div_term                                                    # (max_len, ceil(d/2))
    pe = jnp.zeros((max_len, d_model), dtype=jnp.float32)
    pe = pe.at[:, 0::2].set(jnp.sin(angles))
    if d_model % 2 == 0:
        pe = pe.at[:, 1::2].set(jnp.cos(angles))
    else:
        pe = pe.at[:, 1::2].set(jnp.cos(position * div_term[:-1]))
    # unsqueeze(0).transpose(0, 1) -> (max_len, 1, d_model), cast to the model dtype.
    return pe[:, None, :].astype(dtype)


def _round_up(a: int, m: int) -> int:
    return ((a + m - 1) // m) * m


def _add_pe_kernel(x_ref, pe_ref, o_ref, *, batch: int, d_model: int, lane_aligned: bool):
    # x_ref/o_ref: (TS, B*D) lane-dense tiles; pe_ref: (TS, D) tile.
    pe = pe_ref[...]
    if batch == 1:
        o_ref[...] = x_ref[...] + pe
    elif lane_aligned:
        # D % 128 == 0: static lane-aligned slices are free ref views -> no VMEM temp,
        # no extra store traffic, no lane permutes.
        for b in range(batch):
            sl = slice(b * d_model, (b + 1) * d_model)
            o_ref[:, sl] = x_ref[:, sl] + pe
    else:
        # Fallback for non-lane-aligned D: materialize the repeated pe once per step.
        o_ref[...] = x_ref[...] + jnp.tile(pe, (1, batch))


def positional_encoding_forward(
    x: jnp.ndarray,
    pe: jnp.ndarray,
    *,
    target_block_bytes: int = 4 << 20,   # ~4 MiB x/out blocks: amortizes step overhead on v6e/v7x
    donate_x: bool = False,              # alias output onto x when the caller no longer needs x
) -> jnp.ndarray:
    """x: (S, B, D), pe: (max_len, 1, D) -> (S, B, D), equal to x + pe[:S]."""
    S, B, D = x.shape
    max_len = pe.shape[0]
    assert pe.shape == (max_len, 1, D) and max_len >= S

    if pe.dtype != x.dtype:
        pe = pe.astype(x.dtype)   # keep the kernel a pure same-dtype add

    # Lane-dense flattening (both reshapes are free on contiguous memory).
    x2 = x.reshape(S, B * D)
    pe2 = pe.reshape(max_len, D)

    itemsize = jnp.dtype(x.dtype).itemsize
    # dtype-native sublane multiple: 8 for f32, 16 for bf16/f16, 32 for int8/fp8.
    sub = max(8, 32 // itemsize)
    row_bytes = B * D * itemsize

    # Sequence-tile size: ~target_block_bytes per x/out block, rounded to `sub` sublanes.
    ts = max(sub, (target_block_bytes // max(row_bytes, 1) // sub) * sub)
    # Guarantee >= 2 grid steps whenever S allows it: keeps both v7x TensorCores busy
    # (dimension_semantics=("parallel",)) and keeps DMA/compute pipelining active.
    if S > sub:
        ts = min(ts, max(sub, _round_up(pl.cdiv(S, 2), sub)))
    if ts >= S:
        ts = S

    if ts % 8 != 0:
        # ts == S with S not a multiple of 8: a block's sublane dim must be a multiple of 8
        # or equal the full array dim, so make pe's full dim exactly S (tiny one-off slice).
        pe2 = pe2[:S]

    lane_aligned = (D % 128 == 0)
    grid = (pl.cdiv(S, ts),)   # ragged last block handled by Pallas (reads padded, writes masked)

    # Explicit scoped-VMEM budget: double-buffered x, out, pe (+ the tile temp on the
    # fallback path), with slack.  Baseline 32 MiB, capped at 48 MiB (v7x physical = 64 MiB).
    x_block_bytes = ts * B * D * itemsize
    pe_block_bytes = ts * D * itemsize
    vmem_needed = 2 * (2 * x_block_bytes + pe_block_bytes)
    if not (lane_aligned or B == 1):
        vmem_needed += x_block_bytes
    vmem_limit = int(min(48 << 20, max(32 << 20, vmem_needed * 3 // 2)))

    cost = pl.CostEstimate(
        flops=S * B * D,
        transcendentals=0,
        bytes_accessed=(2 * S * B * D + S * D) * itemsize,
    )

    out2 = pl.pallas_call(
        functools.partial(_add_pe_kernel, batch=B, d_model=D, lane_aligned=lane_aligned),
        out_shape=jax.ShapeDtypeStruct((S, B * D), x.dtype),
        grid_spec=pltpu.PrefetchScalarGridSpec(
            num_scalar_prefetch=0,
            grid=grid,
            in_specs=[
                pl.BlockSpec((ts, B * D), lambda i: (i, 0)),
                pl.BlockSpec((ts, D), lambda i: (i, 0)),
            ],
            out_specs=pl.BlockSpec((ts, B * D), lambda i: (i, 0)),
        ),
        compiler_params=pltpu.CompilerParams(
            dimension_semantics=("parallel",),   # shards S-tiles across TCs on megacore parts
            vmem_limit_bytes=vmem_limit,
        ),
        cost_estimate=cost,
        # x2 is operand 0 because num_scalar_prefetch == 0; update the index if
        # scalar-prefetch args are ever added.
        input_output_aliases=({0: 0} if donate_x else {}),
    )(x2, pe2)

    return out2.reshape(S, B, D)


if __name__ == "__main__":
    key = jax.random.PRNGKey(0)
    k1, k2, k3 = jax.random.split(key, 3)

    # Test 1: non-lane-aligned D (jnp.tile fallback path), single-block grid.
    d1, max_len1 = 32, 64
    pe_tab1 = _build_pe_table(d1, max_len1)
    S1, B1 = 8, 2
    x1 = jax.random.normal(k1, (S1, B1, d1), dtype=jnp.float32)
    out1 = jax.block_until_ready(positional_encoding_forward(x1, pe_tab1))
    ref1 = x1 + pe_tab1[:S1]
    assert out1.shape == (S1, B1, d1)
    assert jnp.allclose(out1, ref1, atol=1e-6), "mismatch vs reference (test 1)"

    # Test 2: lane-aligned D=128 (per-batch static-slice path), multi-block ragged grid.
    d2, max_len2 = 128, 64
    pe_tab2 = _build_pe_table(d2, max_len2)
    S2, B2 = 44, 2
    x2 = jax.random.normal(k2, (S2, B2, d2), dtype=jnp.float32)
    out2 = jax.block_until_ready(
        positional_encoding_forward(x2, pe_tab2, target_block_bytes=8192)
    )
    ref2 = x2 + pe_tab2[:S2]
    assert out2.shape == (S2, B2, d2)
    assert jnp.allclose(out2, ref2, atol=1e-6), "mismatch vs reference (test 2)"

    # Test 3: bf16 input (16-row sublane rounding, pe cast in the wrapper), multi-block grid.
    d3, max_len3 = 128, 128
    pe_tab3 = _build_pe_table(d3, max_len3)
    S3, B3 = 48, 2
    x3 = jax.random.normal(k3, (S3, B3, d3), dtype=jnp.float32).astype(jnp.bfloat16)
    out3 = jax.block_until_ready(
        positional_encoding_forward(x3, pe_tab3, target_block_bytes=16384)
    )
    ref3 = x3 + pe_tab3[:S3].astype(jnp.bfloat16)
    assert out3.shape == (S3, B3, d3)
    assert jnp.allclose(out3, ref3), "mismatch vs reference (test 3)"

    print("KERNEL_OK")
</pallas_src>

<mosaic_0001>
module attributes {stable_mosaic.version = 11 : i64} {
  func.func @_add_pe_kernel(%arg0: i32, %arg1: memref<8x64xf32, #tpu.memory_space<vmem>>, %arg2: memref<8x32xf32, #tpu.memory_space<vmem>>, %arg3: memref<8x64xf32, #tpu.memory_space<vmem>>) attributes {dimension_semantics = [#tpu.dimension_semantics<parallel>], iteration_bounds = array<i64: 1>, scalar_prefetch = 0 : i64, scratch_operands = 0 : i64, tpu.core_type = #tpu.core_type<tc>, window_params = [{transform_indices = @transform_0, window_bounds = array<i64: 8, 64>}, {transform_indices = @transform_1, window_bounds = array<i64: 8, 32>}, {transform_indices = @transform_2, window_bounds = array<i64: 8, 64>}]} {
    %c0 = arith.constant 0 : index
    %c0_0 = arith.constant 0 : index
    %0 = vector.load %arg2[%c0, %c0_0] : memref<8x32xf32, #tpu.memory_space<vmem>>, vector<8x32xf32>
    %c0_1 = arith.constant 0 : index
    %c0_2 = arith.constant 0 : index
    %1 = vector.load %arg1[%c0_1, %c0_2] : memref<8x64xf32, #tpu.memory_space<vmem>>, vector<8x64xf32>
    %2 = tpu.concatenate %0, %0 in 1 : vector<8x32xf32>, vector<8x32xf32> -> vector<8x64xf32>
    %3 = arith.addf %1, %2 : vector<8x64xf32>
    %c0_3 = arith.constant 0 : index
    %c0_4 = arith.constant 0 : index
    %4 = vector.load %arg3[%c0_3, %c0_4] : memref<8x64xf32, #tpu.memory_space<vmem>>, vector<8x64xf32>
    tpu.vector_store %arg3[%c0_3, %c0_4], %3 {strides = array<i32>} : memref<8x64xf32, #tpu.memory_space<vmem>>, vector<8x64xf32>,
    return
  }
  func.func @transform_0(%arg0: i32) -> (i32, i32) {
    %c0_i32 = arith.constant 0 : i32
    %c0_i32_0 = arith.constant 0 : i32
    return %arg0, %c0_i32 : i32, i32
  }
  func.func @transform_1(%arg0: i32) -> (i32, i32) {
    %c0_i32 = arith.constant 0 : i32
    %c0_i32_0 = arith.constant 0 : i32
    return %arg0, %c0_i32 : i32, i32
  }
  func.func @transform_2(%arg0: i32) -> (i32, i32) {
    %c0_i32 = arith.constant 0 : i32
    %c0_i32_0 = arith.constant 0 : i32
    return %arg0, %c0_i32 : i32, i32
  }
}

</mosaic_0001>

<llo_original>
// kernel: tpu_custom_call.1
$region0: #{tpu_custom_call.1}
  #allocation0 [shape = 'u32[]', space=smem, size = 0x4, offset = 0x4, fixed_abs, tag = 'smem constant byte address 0x4 - core index']
  #allocation1 [shape = 'u32[144,128]{1,0:T(1,128)}', space=vmem, size = 0x12000, scoped, tag = 'internal scratch']
  %s0 = inlined_call_operand.vmem [shape: f32[8,64], index: 0, kind: input, shape index: {}]
  %s1 = inlined_call_operand.vmem [shape: f32[64,32], index: 1, kind: input, shape index: {}]
  %s2 = inlined_call_operand.hbm [shape: f32[8,64], index: 2, kind: output, shape index: {}]
  %s3 = sld [smem:[#allocation0]]
  $region18: #{tpu_custom_call.1} parent=0
    _
  %s5 = ssub.s32 1, %s3
  %s6 = scalar_select 0, %s5, %s3
  $region1: #{tpu_custom_call.1} parent=0
    #allocation2 [shape = 'u8[4096]{0}', space=vmem, size = 0x1000, scoped, tag = 'output window, operand 0, single buffered']
    #allocation3 [shape = 's32[1]{0}', space=sflag, size = 0x4, scoped, tag = 'scoped memory for tpu_custom_call.1']
    %7 = vsyncpa [#allocation3], 0
    // Predicated region
    $region2: #{tpu_custom_call.1} parent=1 // pred_check
      _
    $region3: #{tpu_custom_call.1} parent=1 // pred_check_branch
      %9 = sbr.rel (0) target = $region5
    $region4: #{tpu_custom_call.1} parent=1 // pred_region
      _
    $region5: #{tpu_custom_call.1} parent=1 // pred_fallthru
      _
    // Predicated region
    $region6: #{tpu_custom_call.1} parent=1 // pred_check
      _
    $region7: #{tpu_custom_call.1} parent=1 // pred_check_branch
      %11 = sbr.rel (0) target = $region9
    $region8: #{tpu_custom_call.1} parent=1 // pred_region
      _
    $region9: #{tpu_custom_call.1} parent=1 // pred_fallthru
      _
    %v12 = vld [vmem:[%s1] sm:$0xff]
    %v13 = vld [vmem:[%s0] sm:$0xff]
    %15 = vrot.lane.b32.xlu0 %v12, 32
    %v16 = vpop.permute.xlu0 %15
    %vm18 = vcmask 261120
    %v19 = vsel %vm18, %v12, %v16
    %v20 = vadd.f32 %v13, %v19
    %vm21 = vcmask 523264
    %22 = vst.msk [vmem:[#allocation2] sm:$0xff] %vm21, %v20
    // Predicated region
    $region10: #{tpu_custom_call.1} parent=1 // pred_check
      _
    $region11: #{tpu_custom_call.1} parent=1 // pred_check_branch
      %24 = sbr.rel (0) target = $region13
    $region12: #{tpu_custom_call.1} parent=1 // pred_region
      %s26 = ssub.s32 128, 128
      %27 = vsyncadd [#allocation3], %s26
      %s29 = sshll.u32 [#allocation2], 4
      %s30 = int_to_ptr.vmem [resolvable:$true] %s29
      %32 = dma.vmem_to_hbm [thread:$0]  %s30, 128, %s2, [#allocation3]
    $region13: #{tpu_custom_call.1} parent=1 // pred_fallthru
      _
    // Predicated region
    $region14: #{tpu_custom_call.1} parent=1 // pred_check
      _
    $region15: #{tpu_custom_call.1} parent=1 // pred_check_branch
      %34 = sbr.rel (0) target = $region17
    $region16: #{tpu_custom_call.1} parent=1 // pred_region
      %35 = dma.done [#allocation3], 128
    $region17: #{tpu_custom_call.1} parent=1 // pred_fallthru
      _
    %36 = vsyncpa [#allocation3], 1

</llo_original>
